<compile_context>
chip_gen: v6e
topology: v6e:2x2x1
jax: 0.10.0
libtpu: 0.0.40
codegen_flags: <defaults>
</compile_context>

<pallas_src>
import functools

import jax
import jax.numpy as jnp
from jax.experimental import pallas as pl
from jax.experimental.pallas import tpu as pltpu


# ----------------------------------------------------------------------------
# Fused Pallas kernel: conv-as-GEMM + ReLU -> sum pool -> FC+ReLU -> FC
# ----------------------------------------------------------------------------
def _fused_irm_kernel(patch_ref, wc_ref, bc_ref, wf_ref, bf_ref, wl_ref, bl_ref,
                      out_ref, *, HW, F, NC):
    """One batch block, fully fused.

    patch_ref: (TB*HW, 9*C)  bf16 im2col patches for TB images (VMEM)
    wc_ref:    (9*C, Cout)   bf16 conv weight, tap-major (di,dj), channel minor
    bc_ref:    (1, Cout)     f32 conv bias
    wf_ref:    (Cout, F)     f32 feature weight, pre-scaled by 1/(H*W)
    bf_ref:    (1, F)        f32 feature bias
    wl_ref:    (F, NC), bl_ref: (1, NC)   classifier head (f32)
    out_ref:   (TB, OUT_W)   lane-dense merged output:
                             feats in lanes [0,F), logits in lanes [F,F+NC)
    """
    TB, OUT_W = out_ref.shape
    Cout = wc_ref.shape[1]

    # Single MXU dot over the full contraction depth K = 9*C (bf16 operands,
    # f32 accumulate inside the MXU), then bias + ReLU on the VPU.
    conv = jnp.dot(patch_ref[...], wc_ref[...],
                   preferred_element_type=jnp.float32)        # (TB*HW, Cout)
    conv = jnp.maximum(conv + bc_ref[...], 0.0)

    # Global sum-pool over spatial positions (the mean's 1/(H*W) is folded
    # into wf_ref by the wrapper). XLU reduction on the resident activation.
    pooled = jnp.sum(conv.reshape(TB, HW, Cout), axis=1)      # (TB, Cout)

    # Feature head + classifier head on the small resident (TB, Cout) tile.
    feats = jnp.maximum(
        jnp.dot(pooled, wf_ref[...], preferred_element_type=jnp.float32)
        + bf_ref[...], 0.0)                                   # (TB, F)
    logits = (jnp.dot(feats, wl_ref[...], preferred_element_type=jnp.float32)
              + bl_ref[...])                                  # (TB, NC)

    # Lane-dense merged output block (single unmasked 128-lane store).
    merged = jnp.concatenate(
        [feats, logits, jnp.zeros((TB, OUT_W - F - NC), jnp.float32)], axis=-1)
    out_ref[...] = merged.astype(out_ref.dtype)


def irm_fused_forward(x_nchw, w_conv_mat, b_conv, w_feat, b_feat, w_cls, b_cls,
                      *, block_b=64):
    """Full forward (logits, feats) with a single pallas_call.

    x_nchw: (B, C, H, W) float32 (PyTorch-style layout).
    block_b: batch images per grid step; must be a multiple of 8 when B > block_b.
    """
    B, C, H, W = x_nchw.shape
    HW = H * W
    K = 9 * C
    Cout = w_conv_mat.shape[1]
    F = w_feat.shape[1]
    NC = w_cls.shape[1]
    OUT_W = pl.cdiv(F + NC, 128) * 128                        # lane-dense width

    # ---- XLA glue: NCHW -> NHWC, 1-px zero pad, im2col to (B*HW, 9*C) ------
    # Tap order (di, dj) with channel minor matches w_conv_mat's layout.
    x_nhwc = jnp.transpose(x_nchw, (0, 2, 3, 1))
    xp = jnp.pad(x_nhwc, ((0, 0), (1, 1), (1, 1), (0, 0)))    # (B, H+2, W+2, C)
    taps = [xp[:, di:di + H, dj:dj + W, :]
            for di in range(3) for dj in range(3)]
    patches = jnp.concatenate(taps, axis=-1).reshape(B * HW, K)
    # bf16 MXU operands (f32 accumulation in-kernel); halves input DMA bytes.
    patches = patches.astype(jnp.bfloat16)

    # ---- batch tiling -------------------------------------------------------
    if B <= block_b:
        TB = B                                    # single block == full array
    else:
        assert block_b % 8 == 0, "block_b must be a multiple of 8"
        TB = block_b
    B_pad = pl.cdiv(B, TB) * TB
    if B_pad != B:
        patches = jnp.pad(patches, ((0, (B_pad - B) * HW), (0, 0)))

    # Fold the 1/(H*W) pooling scale into the feature weight (sum-pool in-kernel).
    w_feat_scaled = w_feat * (1.0 / float(HW))

    kernel = functools.partial(_fused_irm_kernel, HW=HW, F=F, NC=NC)

    out = pl.pallas_call(
        kernel,
        out_shape=jax.ShapeDtypeStruct((B_pad, OUT_W), jnp.float32),
        grid=(B_pad // TB,),
        in_specs=[
            pl.BlockSpec((TB * HW, K), lambda i: (i, 0)),     # patches block
            pl.BlockSpec((K, Cout), lambda i: (0, 0)),        # conv weight
            pl.BlockSpec((1, Cout), lambda i: (0, 0)),        # conv bias
            pl.BlockSpec((Cout, F), lambda i: (0, 0)),        # feat weight
            pl.BlockSpec((1, F), lambda i: (0, 0)),           # feat bias
            pl.BlockSpec((F, NC), lambda i: (0, 0)),          # cls weight
            pl.BlockSpec((1, NC), lambda i: (0, 0)),          # cls bias
        ],
        out_specs=pl.BlockSpec((TB, OUT_W), lambda i: (i, 0)),
        compiler_params=pltpu.CompilerParams(
            # Batch blocks shard across v7x's two TensorCores when the grid
            # has >= 2 steps (tiny demo batches produce a single step).
            dimension_semantics=("parallel",),
            # Sized so block_b=64 (bf16 patches + f32 activation, both lane-
            # padded to 128) double-buffers comfortably within v7x's 64 MiB
            # physical VMEM; v5e/v6e have 128 MiB and more headroom.
            vmem_limit_bytes=48 * 1024 * 1024,
        ),
    )(patches, w_conv_mat.astype(jnp.bfloat16), b_conv.reshape(1, Cout),
      w_feat_scaled, b_feat.reshape(1, F), w_cls, b_cls.reshape(1, NC))

    feats = out[:B, :F]
    logits = out[:B, F:F + NC]
    return logits, feats


# ----------------------------------------------------------------------------
# Base model + IRM wrapper
# ----------------------------------------------------------------------------
class BaseImageModel:
    """Synthetic base classifier; forward runs in one fused Pallas kernel."""

    def __init__(self, key, in_channels=4, conv_channels=32, feat_dim=32,
                 num_classes=8, block_b=64):
        self.in_channels = in_channels
        self.conv_channels = conv_channels
        self.feat_dim = feat_dim
        self.num_classes = num_classes
        self.block_b = block_b

        k0, k1, k2, k3, k4, k5 = jax.random.split(key, 6)
        # Conv weight in PyTorch layout (C_out, C_in, kH, kW).
        w_conv = 0.1 * jax.random.normal(
            k0, (conv_channels, in_channels, 3, 3), jnp.float32)
        # Reorder to im2col tap layout (kH, kW, C_in, C_out) -> (9*C_in, C_out),
        # tap-major (di, dj) with channel minor — matches the wrapper's im2col.
        self.w_conv_mat = jnp.transpose(w_conv, (2, 3, 1, 0)).reshape(
            9 * in_channels, conv_channels)
        self.b_conv = 0.01 * jax.random.normal(k1, (conv_channels,), jnp.float32)

        self.w_feat = 0.1 * jax.random.normal(
            k2, (conv_channels, feat_dim), jnp.float32)
        self.b_feat = 0.01 * jax.random.normal(k3, (feat_dim,), jnp.float32)

        self.w_cls = 0.1 * jax.random.normal(
            k4, (feat_dim, num_classes), jnp.float32)
        self.b_cls = 0.01 * jax.random.normal(k5, (num_classes,), jnp.float32)

        self._fwd = jax.jit(self._forward_impl)

    def _forward_impl(self, x_nchw):
        return irm_fused_forward(
            x_nchw, self.w_conv_mat, self.b_conv, self.w_feat, self.b_feat,
            self.w_cls, self.b_cls, block_b=self.block_b)

    def get_features(self, x_nchw):
        _, feats = self._fwd(x_nchw)
        return feats

    def __call__(self, x_nchw, return_features=False):
        logits, feats = self._fwd(x_nchw)
        if return_features:
            return logits, feats
        return logits

    # Pure-JAX (XLA, f32) reference of the same math, used only for validation.
    def reference_forward(self, x_nchw):
        B, C, H, W = x_nchw.shape
        x_nhwc = jnp.transpose(x_nchw, (0, 2, 3, 1))
        xp = jnp.pad(x_nhwc, ((0, 0), (1, 1), (1, 1), (0, 0)))
        taps = [xp[:, di:di + H, dj:dj + W, :]
                for di in range(3) for dj in range(3)]
        patches = jnp.concatenate(taps, axis=-1).reshape(B * H * W, 9 * C)
        conv = jnp.maximum(patches @ self.w_conv_mat + self.b_conv, 0.0)
        pooled = jnp.mean(conv.reshape(B, H * W, -1), axis=1)
        feats = jnp.maximum(pooled @ self.w_feat + self.b_feat, 0.0)
        logits = feats @ self.w_cls + self.b_cls
        return logits, feats


class IRMModelPallas:
    """JAX/Pallas equivalent of the PyTorch IRMModel wrapper."""

    def __init__(self, base_model, modality: str = "image"):
        self.base_model = base_model
        self.modality = modality

    def get_features(self, *args):
        if self.modality == "multimodal":
            # TODO(synk): no multimodal base model in the spec; pass-through only.
            return self.base_model.get_features(args[0], args[1])
        return self.base_model.get_features(args[0])

    def forward(self, *args, return_features: bool = False):
        if self.modality == "multimodal":
            if return_features:
                return self.base_model(args[0], args[1], return_features=True)
            return self.base_model(args[0], args[1])
        if return_features:
            return self.base_model(args[0], return_features=True)
        return self.base_model(args[0])

    __call__ = forward


# ----------------------------------------------------------------------------
# Demo
# ----------------------------------------------------------------------------
if __name__ == "__main__":
    key = jax.random.PRNGKey(0)
    k_param, k_data = jax.random.split(key)

    base = BaseImageModel(k_param, in_channels=4, conv_channels=32,
                          feat_dim=32, num_classes=8)
    model = IRMModelPallas(base, modality="image")

    # PyTorch-style NCHW input: batch=2, channels=4, 16x16 spatial.
    x = jax.random.normal(k_data, (2, 4, 16, 16), jnp.float32)

    logits = model(x)                                     # (2, 8)
    logits2, feats = model(x, return_features=True)       # (2, 8), (2, 32)
    feats_only = model.get_features(x)                    # (2, 32)
    jax.block_until_ready((logits, logits2, feats, feats_only))

    # Validate against a pure-JAX f32 reference of the same forward
    # (kernel uses bf16 MXU operands -> small, tolerated drift).
    ref_logits, ref_feats = base.reference_forward(x)
    jax.block_until_ready((ref_logits, ref_feats))

    assert logits.shape == (2, 8)
    assert feats.shape == (2, 32)
    assert jnp.allclose(logits, logits2)
    assert jnp.allclose(feats, feats_only)
    assert jnp.allclose(logits, ref_logits, atol=1e-2, rtol=1e-2)
    assert jnp.allclose(feats, ref_feats, atol=1e-2, rtol=1e-2)
    print("KERNEL_OK")
</pallas_src>

<mosaic_0001>
module attributes {stable_mosaic.version = 11 : i64} {
  func.func @_fused_irm_kernel(%arg0: i32, %arg1: memref<512x36xbf16, #tpu.memory_space<vmem>>, %arg2: memref<36x32xbf16, #tpu.memory_space<vmem>>, %arg3: memref<1x32xf32, #tpu.memory_space<vmem>>, %arg4: memref<32x32xf32, #tpu.memory_space<vmem>>, %arg5: memref<1x32xf32, #tpu.memory_space<vmem>>, %arg6: memref<32x8xf32, #tpu.memory_space<vmem>>, %arg7: memref<1x8xf32, #tpu.memory_space<vmem>>, %arg8: memref<2x128xf32, #tpu.memory_space<vmem>>) attributes {dimension_semantics = [#tpu.dimension_semantics<parallel>], iteration_bounds = array<i64: 1>, scalar_prefetch = 0 : i64, scratch_operands = 0 : i64, tpu.core_type = #tpu.core_type<tc>, window_params = [{transform_indices = @transform_0, window_bounds = array<i64: 512, 36>}, {pipeline_mode = #tpu.pipeline_mode<synchronous>, transform_indices = @transform_1, window_bounds = array<i64: 36, 32>}, {pipeline_mode = #tpu.pipeline_mode<synchronous>, transform_indices = @transform_2, window_bounds = array<i64: 1, 32>}, {pipeline_mode = #tpu.pipeline_mode<synchronous>, transform_indices = @transform_3, window_bounds = array<i64: 32, 32>}, {pipeline_mode = #tpu.pipeline_mode<synchronous>, transform_indices = @transform_4, window_bounds = array<i64: 1, 32>}, {pipeline_mode = #tpu.pipeline_mode<synchronous>, transform_indices = @transform_5, window_bounds = array<i64: 32, 8>}, {pipeline_mode = #tpu.pipeline_mode<synchronous>, transform_indices = @transform_6, window_bounds = array<i64: 1, 8>}, {transform_indices = @transform_7, window_bounds = array<i64: 2, 128>}]} {
    %c0 = arith.constant 0 : index
    %c0_0 = arith.constant 0 : index
    %0 = vector.load %arg1[%c0, %c0_0] : memref<512x36xbf16, #tpu.memory_space<vmem>>, vector<512x36xbf16>
    %c0_1 = arith.constant 0 : index
    %c0_2 = arith.constant 0 : index
    %1 = vector.load %arg2[%c0_1, %c0_2] : memref<36x32xbf16, #tpu.memory_space<vmem>>, vector<36x32xbf16>
    %cst = arith.constant dense<0.000000e+00> : vector<512x32xf32>
    %2 = tpu.matmul %0, %1, %cst {dimension_numbers = #tpu.dot_dimension_numbers<[1], [0], [0], [1], [0, 0, 1, 1], [], []>} : vector<512x36xbf16>, vector<36x32xbf16>, vector<512x32xf32> -> vector<512x32xf32>
    %c0_3 = arith.constant 0 : index
    %c0_4 = arith.constant 0 : index
    %3 = vector.load %arg3[%c0_3, %c0_4] : memref<1x32xf32, #tpu.memory_space<vmem>>, vector<1x32xf32>
    %4 = vector.broadcast %3 : vector<1x32xf32> to vector<512x32xf32>
    %5 = arith.addf %2, %4 : vector<512x32xf32>
    %cst_5 = arith.constant 0.000000e+00 : f32
    %6 = vector.broadcast %cst_5 : f32 to vector<512x32xf32>
    %7 = arith.maximumf %5, %6 : vector<512x32xf32>
    %8 = vector.shape_cast %7 : vector<512x32xf32> to vector<2x256x32xf32>
    %cst_6 = arith.constant dense<0.000000e+00> : vector<2x32xf32>
    %9 = vector.multi_reduction <add>, %8, %cst_6 [1] : vector<2x256x32xf32> to vector<2x32xf32>
    %c0_7 = arith.constant 0 : index
    %c0_8 = arith.constant 0 : index
    %10 = vector.load %arg4[%c0_7, %c0_8] : memref<32x32xf32, #tpu.memory_space<vmem>>, vector<32x32xf32>
    %cst_9 = arith.constant dense<0.000000e+00> : vector<2x32xf32>
    %11 = tpu.matmul %9, %10, %cst_9 {dimension_numbers = #tpu.dot_dimension_numbers<[1], [0], [0], [1], [0, 0, 1, 1], [], []>} : vector<2x32xf32>, vector<32x32xf32>, vector<2x32xf32> -> vector<2x32xf32>
    %c0_10 = arith.constant 0 : index
    %c0_11 = arith.constant 0 : index
    %12 = vector.load %arg5[%c0_10, %c0_11] : memref<1x32xf32, #tpu.memory_space<vmem>>, vector<1x32xf32>
    %13 = vector.broadcast %12 : vector<1x32xf32> to vector<2x32xf32>
    %14 = arith.addf %11, %13 : vector<2x32xf32>
    %cst_12 = arith.constant 0.000000e+00 : f32
    %15 = vector.broadcast %cst_12 : f32 to vector<2x32xf32>
    %16 = arith.maximumf %14, %15 : vector<2x32xf32>
    %c0_13 = arith.constant 0 : index
    %c0_14 = arith.constant 0 : index
    %17 = vector.load %arg6[%c0_13, %c0_14] : memref<32x8xf32, #tpu.memory_space<vmem>>, vector<32x8xf32>
    %cst_15 = arith.constant dense<0.000000e+00> : vector<2x8xf32>
    %18 = tpu.matmul %16, %17, %cst_15 {dimension_numbers = #tpu.dot_dimension_numbers<[1], [0], [0], [1], [0, 0, 1, 1], [], []>} : vector<2x32xf32>, vector<32x8xf32>, vector<2x8xf32> -> vector<2x8xf32>
    %c0_16 = arith.constant 0 : index
    %c0_17 = arith.constant 0 : index
    %19 = vector.load %arg7[%c0_16, %c0_17] : memref<1x8xf32, #tpu.memory_space<vmem>>, vector<1x8xf32>
    %20 = vector.broadcast %19 : vector<1x8xf32> to vector<2x8xf32>
    %21 = arith.addf %18, %20 : vector<2x8xf32>
    %cst_18 = arith.constant 0.000000e+00 : f32
    %22 = vector.broadcast %cst_18 : f32 to vector<2x88xf32>
    %23 = tpu.concatenate %16, %21, %22 in 1 : vector<2x32xf32>, vector<2x8xf32>, vector<2x88xf32> -> vector<2x128xf32>
    %c0_19 = arith.constant 0 : index
    %c0_20 = arith.constant 0 : index
    %24 = vector.load %arg8[%c0_19, %c0_20] : memref<2x128xf32, #tpu.memory_space<vmem>>, vector<2x128xf32>
    tpu.vector_store %arg8[%c0_19, %c0_20], %23 {strides = array<i32>} : memref<2x128xf32, #tpu.memory_space<vmem>>, vector<2x128xf32>,
    return
  }
  func.func @transform_0(%arg0: i32) -> (i32, i32) {
    %c0_i32 = arith.constant 0 : i32
    %c0_i32_0 = arith.constant 0 : i32
    return %arg0, %c0_i32 : i32, i32
  }
  func.func @transform_1(%arg0: i32) -> (i32, i32) {
    %c0_i32 = arith.constant 0 : i32
    %c0_i32_0 = arith.constant 0 : i32
    %c0_i32_1 = arith.constant 0 : i32
    return %c0_i32, %c0_i32_0 : i32, i32
  }
  func.func @transform_2(%arg0: i32) -> (i32, i32) {
    %c0_i32 = arith.constant 0 : i32
    %c0_i32_0 = arith.constant 0 : i32
    %c0_i32_1 = arith.constant 0 : i32
    return %c0_i32, %c0_i32_0 : i32, i32
  }
  func.func @transform_3(%arg0: i32) -> (i32, i32) {
    %c0_i32 = arith.constant 0 : i32
    %c0_i32_0 = arith.constant 0 : i32
    %c0_i32_1 = arith.constant 0 : i32
    return %c0_i32, %c0_i32_0 : i32, i32
  }
  func.func @transform_4(%arg0: i32) -> (i32, i32) {
    %c0_i32 = arith.constant 0 : i32
    %c0_i32_0 = arith.constant 0 : i32
    %c0_i32_1 = arith.constant 0 : i32
    return %c0_i32, %c0_i32_0 : i32, i32
  }
  func.func @transform_5(%arg0: i32) -> (i32, i32) {
    %c0_i32 = arith.constant 0 : i32
    %c0_i32_0 = arith.constant 0 : i32
    %c0_i32_1 = arith.constant 0 : i32
    return %c0_i32, %c0_i32_0 : i32, i32
  }
  func.func @transform_6(%arg0: i32) -> (i32, i32) {
    %c0_i32 = arith.constant 0 : i32
    %c0_i32_0 = arith.constant 0 : i32
    %c0_i32_1 = arith.constant 0 : i32
    return %c0_i32, %c0_i32_0 : i32, i32
  }
  func.func @transform_7(%arg0: i32) -> (i32, i32) {
    %c0_i32 = arith.constant 0 : i32
    %c0_i32_0 = arith.constant 0 : i32
    return %arg0, %c0_i32 : i32, i32
  }
}

</mosaic_0001>

<llo_original>
// kernel: _forward_impl.1
$region0: #{_forward_impl.1}
  #allocation0 [shape = 'u32[]', space=smem, size = 0x4, offset = 0x4, fixed_abs, tag = 'smem constant byte address 0x4 - core index']
  #allocation1 [shape = 'u32[144,128]{1,0:T(1,128)}', space=vmem, size = 0x12000, scoped, tag = 'internal scratch']
  %s0 = inlined_call_operand.vmem [shape: bf16[512,36], index: 0, kind: input, shape index: {}]
  %s1 = inlined_call_operand.vmem [shape: bf16[36,32], index: 1, kind: input, shape index: {}]
  %s2 = inlined_call_operand.vmem [shape: f32[1,32], index: 2, kind: input, shape index: {}]
  %s3 = inlined_call_operand.vmem [shape: f32[32,32], index: 3, kind: input, shape index: {}]
  %s4 = inlined_call_operand.vmem [shape: f32[1,32], index: 4, kind: input, shape index: {}]
  %s5 = inlined_call_operand.vmem [shape: f32[32,8], index: 5, kind: input, shape index: {}]
  %s6 = inlined_call_operand.vmem [shape: f32[1,8], index: 6, kind: input, shape index: {}]
  %s7 = inlined_call_operand.vmem [shape: f32[2,128], index: 7, kind: output, shape index: {}]
  %s8 = sld [smem:[#allocation0]]
  $region38: #{_forward_impl.1} parent=0
    _
  %s10 = ssub.s32 1, %s8
  %s11 = scalar_select 0, %s10, %s8
  // Predicated region
  $region2: #{_forward_impl.1} parent=0 // pred_check
    _
  $region3: #{_forward_impl.1} parent=0 // pred_check_branch
    %13 = sbr.rel (0) target = $region5
  $region4: #{_forward_impl.1} parent=0 // pred_region
    _
  $region5: #{_forward_impl.1} parent=0 // pred_fallthru
    _
  // Predicated region
  $region6: #{_forward_impl.1} parent=0 // pred_check
    _
  $region7: #{_forward_impl.1} parent=0 // pred_check_branch
    %15 = sbr.rel (0) target = $region9
  $region8: #{_forward_impl.1} parent=0 // pred_region
    _
  $region9: #{_forward_impl.1} parent=0 // pred_fallthru
    _
  // Predicated region
  $region10: #{_forward_impl.1} parent=0 // pred_check
    _
  $region11: #{_forward_impl.1} parent=0 // pred_check_branch
    %17 = sbr.rel (0) target = $region13
  $region12: #{_forward_impl.1} parent=0 // pred_region
    _
  $region13: #{_forward_impl.1} parent=0 // pred_fallthru
    _
  // Predicated region
  $region14: #{_forward_impl.1} parent=0 // pred_check
    _
  $region15: #{_forward_impl.1} parent=0 // pred_check_branch
    %19 = sbr.rel (0) target = $region17
  $region16: #{_forward_impl.1} parent=0 // pred_region
    _
  $region17: #{_forward_impl.1} parent=0 // pred_fallthru
    _
  // Predicated region
  $region18: #{_forward_impl.1} parent=0 // pred_check
    _
  $region19: #{_forward_impl.1} parent=0 // pred_check_branch
    %21 = sbr.rel (0) target = $region21
  $region20: #{_forward_impl.1} parent=0 // pred_region
    _
  $region21: #{_forward_impl.1} parent=0 // pred_fallthru
    _
  // Predicated region
  $region22: #{_forward_impl.1} parent=0 // pred_check
    _
  $region23: #{_forward_impl.1} parent=0 // pred_check_branch
    %23 = sbr.rel (0) target = $region25
  $region24: #{_forward_impl.1} parent=0 // pred_region
    _
  $region25: #{_forward_impl.1} parent=0 // pred_fallthru
    _
  // Predicated region
  $region26: #{_forward_impl.1} parent=0 // pred_check
    _
  $region27: #{_forward_impl.1} parent=0 // pred_check_branch
    %25 = sbr.rel (0) target = $region29
  $region28: #{_forward_impl.1} parent=0 // pred_region
    _
  $region29: #{_forward_impl.1} parent=0 // pred_fallthru
    _
  %v27 = vld [vmem:[%s0] sm:$0xf]
  %v28 = vld [vmem:[%s0 + $0x4] sm:$0xf]
  %v29 = vld [vmem:[%s0 + $0x8] sm:$0xf]
  %v30 = vld [vmem:[%s0 + $0xc] sm:$0xf]
  %v31 = vld [vmem:[%s0 + $0x10] sm:$0xf]
  %v32 = vld [vmem:[%s0 + $0x14] sm:$0xf]
  %v33 = vld [vmem:[%s0 + $0x18] sm:$0xf]
  %v34 = vld [vmem:[%s0 + $0x1c] sm:$0xf]
  %v35 = vld [vmem:[%s0 + $0x20] sm:$0xf]
  %v36 = vld [vmem:[%s0 + $0x24] sm:$0xf]
  %v37 = vld [vmem:[%s0 + $0x28] sm:$0xf]
  %v38 = vld [vmem:[%s0 + $0x2c] sm:$0xf]
  %v39 = vld [vmem:[%s0 + $0x30] sm:$0xf]
  %v40 = vld [vmem:[%s0 + $0x34] sm:$0xf]
  %v41 = vld [vmem:[%s0 + $0x38] sm:$0xf]
  %v42 = vld [vmem:[%s0 + $0x3c] sm:$0xf]
  %v43 = vld [vmem:[%s0 + $0x40] sm:$0xf]
  %v44 = vld [vmem:[%s0 + $0x44] sm:$0xf]
  %v45 = vld [vmem:[%s0 + $0x48] sm:$0xf]
  %v46 = vld [vmem:[%s0 + $0x4c] sm:$0xf]
  %v47 = vld [vmem:[%s0 + $0x50] sm:$0xf]
  %v48 = vld [vmem:[%s0 + $0x54] sm:$0xf]
  %v49 = vld [vmem:[%s0 + $0x58] sm:$0xf]
  %v50 = vld [vmem:[%s0 + $0x5c] sm:$0xf]
  %v51 = vld [vmem:[%s0 + $0x60] sm:$0xf]
  %v52 = vld [vmem:[%s0 + $0x64] sm:$0xf]
  %v53 = vld [vmem:[%s0 + $0x68] sm:$0xf]
  %v54 = vld [vmem:[%s0 + $0x6c] sm:$0xf]
  %v55 = vld [vmem:[%s0 + $0x70] sm:$0xf]
  %v56 = vld [vmem:[%s0 + $0x74] sm:$0xf]
  %v57 = vld [vmem:[%s0 + $0x78] sm:$0xf]
  %v58 = vld [vmem:[%s0 + $0x7c] sm:$0xf]
  %v59 = vld [vmem:[%s0 + $0x80] sm:$0xf]
  %v60 = vld [vmem:[%s0 + $0x84] sm:$0xf]
  %v61 = vld [vmem:[%s0 + $0x88] sm:$0xf]
  %v62 = vld [vmem:[%s0 + $0x8c] sm:$0xf]
  %v63 = vld [vmem:[%s0 + $0x90] sm:$0xf]
  %v64 = vld [vmem:[%s0 + $0x94] sm:$0xf]
  %v65 = vld [vmem:[%s0 + $0x98] sm:$0xf]
  %v66 = vld [vmem:[%s0 + $0x9c] sm:$0xf]
  %v67 = vld [vmem:[%s0 + $0xa0] sm:$0xf]
  %v68 = vld [vmem:[%s0 + $0xa4] sm:$0xf]
  %v69 = vld [vmem:[%s0 + $0xa8] sm:$0xf]
  %v70 = vld [vmem:[%s0 + $0xac] sm:$0xf]
  %v71 = vld [vmem:[%s0 + $0xb0] sm:$0xf]
  %v72 = vld [vmem:[%s0 + $0xb4] sm:$0xf]
  %v73 = vld [vmem:[%s0 + $0xb8] sm:$0xf]
  %v74 = vld [vmem:[%s0 + $0xbc] sm:$0xf]
  %v75 = vld [vmem:[%s0 + $0xc0] sm:$0xf]
  %v76 = vld [vmem:[%s0 + $0xc4] sm:$0xf]
  %v77 = vld [vmem:[%s0 + $0xc8] sm:$0xf]
  %v78 = vld [vmem:[%s0 + $0xcc] sm:$0xf]
  %v79 = vld [vmem:[%s0 + $0xd0] sm:$0xf]
  %v80 = vld [vmem:[%s0 + $0xd4] sm:$0xf]
  %v81 = vld [vmem:[%s0 + $0xd8] sm:$0xf]
  %v82 = vld [vmem:[%s0 + $0xdc] sm:$0xf]
  %v83 = vld [vmem:[%s0 + $0xe0] sm:$0xf]
  %v84 = vld [vmem:[%s0 + $0xe4] sm:$0xf]
  %v85 = vld [vmem:[%s0 + $0xe8] sm:$0xf]
  %v86 = vld [vmem:[%s0 + $0xec] sm:$0xf]
  %v87 = vld [vmem:[%s0 + $0xf0] sm:$0xf]
  %v88 = vld [vmem:[%s0 + $0xf4] sm:$0xf]
  %v89 = vld [vmem:[%s0 + $0xf8] sm:$0xf]
  %v90 = vld [vmem:[%s0 + $0xfc] sm:$0xf]
  %v91 = vld [vmem:[%s1] sm:$0xf]
  %v92 = vld [vmem:[%s1 + $0x4] sm:$0xf]
  %v93 = vld [vmem:[%s1 + $0x8] sm:$0xf]
  %v94 = vld [vmem:[%s1 + $0xc] sm:$0xf]
  %v95 = vld [vmem:[%s1 + $0x10] sm:$0x3]
  %v96 = vld [vmem:[%s2] sm:$0x1]
  %v98 = vlaneseq
  %v99 = vshrl.u32 %v98, 7
  %v100 = vsub.s32 0, %v99
  %v101 = vrot.slane %v96, %v100
  %v167 = vunpack.c.l.b16 %v27
  %v168 = vunpack.c.l.b16 %v28
  %v169 = vunpack.c.l.b16 %v29
  %v170 = vunpack.c.l.b16 %v30
  %v171 = vunpack.c.l.b16 %v31
  %v172 = vunpack.c.l.b16 %v32
  %v173 = vunpack.c.l.b16 %v33
  %v174 = vunpack.c.l.b16 %v34
  %v175 = vunpack.c.l.b16 %v35
  %v176 = vunpack.c.l.b16 %v36
  %v177 = vunpack.c.l.b16 %v37
  %v178 = vunpack.c.l.b16 %v38
  %v179 = vunpack.c.l.b16 %v39
  %v180 = vunpack.c.l.b16 %v40
  %v181 = vunpack.c.l.b16 %v41
  %v182 = vunpack.c.l.b16 %v42
  %v183 = vunpack.c.l.b16 %v43
  %v184 = vunpack.c.l.b16 %v44
  %v185 = vunpack.c.l.b16 %v45
  %v186 = vunpack.c.l.b16 %v46
  %v187 = vunpack.c.l.b16 %v47
  %v188 = vunpack.c.l.b16 %v48
  %v189 = vunpack.c.l.b16 %v49
  %v190 = vunpack.c.l.b16 %v50
  %v191 = vunpack.c.l.b16 %v51
  %v192 = vunpack.c.l.b16 %v52
  %v193 = vunpack.c.l.b16 %v53
  %v194 = vunpack.c.l.b16 %v54
  %v195 = vunpack.c.l.b16 %v55
  %v196 = vunpack.c.l.b16 %v56
  %v197 = vunpack.c.l.b16 %v57
  %v198 = vunpack.c.l.b16 %v58
  %v199 = vunpack.c.l.b16 %v59
  %v200 = vunpack.c.l.b16 %v60
  %v201 = vunpack.c.l.b16 %v61
  %v202 = vunpack.c.l.b16 %v62
  %v203 = vunpack.c.l.b16 %v63
  %v204 = vunpack.c.l.b16 %v64
  %v205 = vunpack.c.l.b16 %v65
  %v206 = vunpack.c.l.b16 %v66
  %v207 = vunpack.c.l.b16 %v67
  %v208 = vunpack.c.l.b16 %v68
  %v209 = vunpack.c.l.b16 %v69
  %v210 = vunpack.c.l.b16 %v70
  %v211 = vunpack.c.l.b16 %v71
  %v212 = vunpack.c.l.b16 %v72
  %v213 = vunpack.c.l.b16 %v73
  %v214 = vunpack.c.l.b16 %v74
  %v215 = vunpack.c.l.b16 %v75
  %v216 = vunpack.c.l.b16 %v76
  %v217 = vunpack.c.l.b16 %v77
  %v218 = vunpack.c.l.b16 %v78
  %v219 = vunpack.c.l.b16 %v79
  %v220 = vunpack.c.l.b16 %v80
  %v221 = vunpack.c.l.b16 %v81
  %v222 = vunpack.c.l.b16 %v82
  %v223 = vunpack.c.l.b16 %v83
  %v224 = vunpack.c.l.b16 %v84
  %v225 = vunpack.c.l.b16 %v85
  %v226 = vunpack.c.l.b16 %v86
  %v227 = vunpack.c.l.b16 %v87
  %v228 = vunpack.c.l.b16 %v88
  %v229 = vunpack.c.l.b16 %v89
  %v230 = vunpack.c.l.b16 %v90
  %v231 = vpack.c.b16 %v168, %v167
  %v232 = vpack.c.b16 %v170, %v169
  %v233 = vpack.c.b16 %v172, %v171
  %v234 = vpack.c.b16 %v174, %v173
  %v235 = vpack.c.b16 %v176, %v175
  %v236 = vpack.c.b16 %v178, %v177
  %v237 = vpack.c.b16 %v180, %v179
  %v238 = vpack.c.b16 %v182, %v181
  %v239 = vpack.c.b16 %v184, %v183
  %v240 = vpack.c.b16 %v186, %v185
  %v241 = vpack.c.b16 %v188, %v187
  %v242 = vpack.c.b16 %v190, %v189
  %v243 = vpack.c.b16 %v192, %v191
  %v244 = vpack.c.b16 %v194, %v193
  %v245 = vpack.c.b16 %v196, %v195
  %v246 = vpack.c.b16 %v198, %v197
  %v247 = vpack.c.b16 %v200, %v199
  %v248 = vpack.c.b16 %v202, %v201
  %v249 = vpack.c.b16 %v204, %v203
  %v250 = vpack.c.b16 %v206, %v205
  %v251 = vpack.c.b16 %v208, %v207
  %v252 = vpack.c.b16 %v210, %v209
  %v253 = vpack.c.b16 %v212, %v211
  %v254 = vpack.c.b16 %v214, %v213
  %v255 = vpack.c.b16 %v216, %v215
  %v256 = vpack.c.b16 %v218, %v217
  %v257 = vpack.c.b16 %v220, %v219
  %v258 = vpack.c.b16 %v222, %v221
  %v259 = vpack.c.b16 %v224, %v223
  %v260 = vpack.c.b16 %v226, %v225
  %v261 = vpack.c.b16 %v228, %v227
  %v262 = vpack.c.b16 %v230, %v229
  %v268 = vunpack.c.l.b16 %v91
  %v269 = vunpack.c.l.b16 %v92
  %v270 = vunpack.c.l.b16 %v93
  %v271 = vunpack.c.l.b16 %v94
  %v272 = vunpack.c.l.b16 %v95
  %v273 = vpack.c.b16 %v269, %v268
  %v274 = vpack.c.b16 %v271, %v270
  %v275 = vpack.c.b16 %v272, %v272
  %vm278 = vcmask 293888
  %v280 = vsel %vm278, %v231, 0
  %v283 = vsel %vm278, %v232, 0
  %v286 = vsel %vm278, %v233, 0
  %v289 = vsel %vm278, %v234, 0
  %v292 = vsel %vm278, %v235, 0
  %v295 = vsel %vm278, %v236, 0
  %v298 = vsel %vm278, %v237, 0
  %v301 = vsel %vm278, %v238, 0
  %v304 = vsel %vm278, %v239, 0
  %v307 = vsel %vm278, %v240, 0
  %v310 = vsel %vm278, %v241, 0
  %v313 = vsel %vm278, %v242, 0
  %v316 = vsel %vm278, %v243, 0
  %v319 = vsel %vm278, %v244, 0
  %v322 = vsel %vm278, %v245, 0
  %v325 = vsel %vm278, %v246, 0
  %v328 = vsel %vm278, %v247, 0
  %v331 = vsel %vm278, %v248, 0
  %v334 = vsel %vm278, %v249, 0
  %v337 = vsel %vm278, %v250, 0
  %v340 = vsel %vm278, %v251, 0
  %v343 = vsel %vm278, %v252, 0
  %v346 = vsel %vm278, %v253, 0
  %v349 = vsel %vm278, %v254, 0
  %v352 = vsel %vm278, %v255, 0
  %v355 = vsel %vm278, %v256, 0
  %v358 = vsel %vm278, %v257, 0
  %v361 = vsel %vm278, %v258, 0
  %v364 = vsel %vm278, %v259, 0
  %v367 = vsel %vm278, %v260, 0
  %v370 = vsel %vm278, %v261, 0
  %v373 = vsel %vm278, %v262, 0
  %vm375 = vcmask 1041408
  %v377 = vsel %vm375, %v275, 0
  %379 = vmatprep.subr.bf16.mxu0 0
  %380 = vmatpush1.bf16.msra.mxu0 0
  %381 = vmatprep.subr.bf16.mxu0 0
  %382 = vmatpush1.bf16.msra.mxu0 0
  %383 = vmatprep.subr.bf16.mxu0 0
  %384 = vmatpush1.bf16.msra.mxu0 0
  %385 = vmatprep.subr.bf16.mxu0 0
  %386 = vmatpush1.bf16.msra.mxu0 0
  %387 = vmatprep.subr.bf16.mxu0 0
  %388 = vmatpush1.bf16.msra.mxu0 0
  %389 = vmatprep.subr.bf16.mxu0 0
  %390 = vmatpush1.bf16.msra.mxu0 %v377
  %391 = vmatprep.subr.bf16.mxu0 0
  %392 = vmatpush1.bf16.msra.mxu0 %v274
  %393 = vmatprep.subr.bf16.mxu0 0
  %394 = vmatpush1.bf16.msra.mxu0 %v273
  %395 = vmatprep.subr.bf16.mxu0 0
  %396 = vmatpush2.bf16.msra.mxu0 0
  %397 = vmatprep.subr.bf16.mxu0 0
  %398 = vmatpush2.bf16.msra.mxu0 0
  %399 = vmatprep.subr.bf16.mxu0 0
  %400 = vmatpush2.bf16.msra.mxu0 0
  %401 = vmatprep.subr.bf16.mxu0 0
  %402 = vmatpush2.bf16.msra.mxu0 0
  %403 = vmatprep.subr.bf16.mxu0 0
  %404 = vmatpush2.bf16.msra.mxu0 0
  %405 = vmatprep.subr.bf16.mxu0 0
  %406 = vmatpush2.bf16.msra.mxu0 0
  %407 = vmatprep.subr.bf16.mxu0 0
  %408 = vmatpush2.bf16.msra.mxu0 0
  %409 = vmatprep.subr.bf16.mxu0 0
  %410 = vmatpush2.bf16.msra.mxu0 0
  %411 = vmatprep.mubr.bf16.mxu0 0
  %412 = vmatmul.mubr.bf16.gmra.mxu0 %v280
  %v413 = vpop.f32.mrf.mxu0
  %v414 = vadd.f32 %v101, %v413
  %v415 = vpop.f32.mrf.mxu0
  %v416 = vpop.f32.mrf.mxu0
  %v417 = vadd.f32 %v101, %v416
  %v418 = vpop.f32.mrf.mxu0
  %419 = vmatprep.mubr.bf16.mxu0 0
  %420 = vmatmul.mubr.bf16.gmra.mxu0 %v283
  %v421 = vpop.f32.mrf.mxu0
  %v422 = vadd.f32 %v101, %v421
  %v423 = vpop.f32.mrf.mxu0
  %v424 = vpop.f32.mrf.mxu0
  %v425 = vadd.f32 %v101, %v424
  %v426 = vpop.f32.mrf.mxu0
  %427 = vmatprep.mubr.bf16.mxu0 0
  %428 = vmatmul.mubr.bf16.gmra.mxu0 %v286
  %v429 = vpop.f32.mrf.mxu0
  %v430 = vadd.f32 %v101, %v429
  %v431 = vpop.f32.mrf.mxu0
  %v432 = vpop.f32.mrf.mxu0
  %v433 = vadd.f32 %v101, %v432
  %v434 = vpop.f32.mrf.mxu0
  %435 = vmatprep.mubr.bf16.mxu0 0
  %436 = vmatmul.mubr.bf16.gmra.mxu0 %v289
  %v437 = vpop.f32.mrf.mxu0
  %v438 = vadd.f32 %v101, %v437
  %v439 = vpop.f32.mrf.mxu0
  %v440 = vpop.f32.mrf.mxu0
  %v441 = vadd.f32 %v101, %v440
  %v442 = vpop.f32.mrf.mxu0
  %443 = vmatprep.mubr.bf16.mxu0 0
  %444 = vmatmul.mubr.bf16.gmra.mxu0 %v292
  %v445 = vpop.f32.mrf.mxu0
  %v446 = vadd.f32 %v101, %v445
  %v447 = vpop.f32.mrf.mxu0
  %v448 = vpop.f32.mrf.mxu0
  %v449 = vadd.f32 %v101, %v448
  %v450 = vpop.f32.mrf.mxu0
  %451 = vmatprep.mubr.bf16.mxu0 0
  %452 = vmatmul.mubr.bf16.gmra.mxu0 %v295
  %v453 = vpop.f32.mrf.mxu0
  %v454 = vadd.f32 %v101, %v453
  %v455 = vpop.f32.mrf.mxu0
  %v456 = vpop.f32.mrf.mxu0
  %v457 = vadd.f32 %v101, %v456
  %v458 = vpop.f32.mrf.mxu0
  %459 = vmatprep.mubr.bf16.mxu0 0
  %460 = vmatmul.mubr.bf16.gmra.mxu0 %v298
  %v461 = vpop.f32.mrf.mxu0
  %v462 = vadd.f32 %v101, %v461
  %v463 = vpop.f32.mrf.mxu0
  %v464 = vpop.f32.mrf.mxu0
  %v465 = vadd.f32 %v101, %v464
  %v466 = vpop.f32.mrf.mxu0
  %467 = vmatprep.mubr.bf16.mxu0 0
  %468 = vmatmul.mubr.bf16.gmra.mxu0 %v301
  %v469 = vpop.f32.mrf.mxu0
  %v470 = vadd.f32 %v101, %v469
  %v471 = vpop.f32.mrf.mxu0
  %v472 = vpop.f32.mrf.mxu0
  %v473 = vadd.f32 %v101, %v472
  %v474 = vpop.f32.mrf.mxu0
  %475 = vmatprep.mubr.bf16.mxu0 0
  %476 = vmatmul.mubr.bf16.gmra.mxu0 %v304
  %v477 = vpop.f32.mrf.mxu0
  %v478 = vadd.f32 %v101, %v477
  %v479 = vpop.f32.mrf.mxu0
  %v480 = vpop.f32.mrf.mxu0
  %v481 = vadd.f32 %v101, %v480
  %v482 = vpop.f32.mrf.mxu0
  %483 = vmatprep.mubr.bf16.mxu0 0
  %484 = vmatmul.mubr.bf16.gmra.mxu0 %v307
  %v485 = vpop.f32.mrf.mxu0
  %v486 = vadd.f32 %v101, %v485
  %v487 = vpop.f32.mrf.mxu0
  %v488 = vpop.f32.mrf.mxu0
  %v489 = vadd.f32 %v101, %v488
  %v490 = vpop.f32.mrf.mxu0
  %491 = vmatprep.mubr.bf16.mxu0 0
  %492 = vmatmul.mubr.bf16.gmra.mxu0 %v310
  %v493 = vpop.f32.mrf.mxu0
  %v494 = vadd.f32 %v101, %v493
  %v495 = vpop.f32.mrf.mxu0
  %v496 = vpop.f32.mrf.mxu0
  %v497 = vadd.f32 %v101, %v496
  %v498 = vpop.f32.mrf.mxu0
  %499 = vmatprep.mubr.bf16.mxu0 0
  %500 = vmatmul.mubr.bf16.gmra.mxu0 %v313
  %v501 = vpop.f32.mrf.mxu0
  %v502 = vadd.f32 %v101, %v501
  %v503 = vpop.f32.mrf.mxu0
  %v504 = vpop.f32.mrf.mxu0
  %v505 = vadd.f32 %v101, %v504
  %v506 = vpop.f32.mrf.mxu0
  %507 = vmatprep.mubr.bf16.mxu0 0
  %508 = vmatmul.mubr.bf16.gmra.mxu0 %v316
  %v509 = vpop.f32.mrf.mxu0
  %v510 = vadd.f32 %v101, %v509
  %v511 = vpop.f32.mrf.mxu0
  %v512 = vpop.f32.mrf.mxu0
  %v513 = vadd.f32 %v101, %v512
  %v514 = vpop.f32.mrf.mxu0
  %515 = vmatprep.mubr.bf16.mxu0 0
  %516 = vmatmul.mubr.bf16.gmra.mxu0 %v319
  %v517 = vpop.f32.mrf.mxu0
  %v518 = vadd.f32 %v101, %v517
  %v519 = vpop.f32.mrf.mxu0
  %v520 = vpop.f32.mrf.mxu0
  %v521 = vadd.f32 %v101, %v520
  %v522 = vpop.f32.mrf.mxu0
  %523 = vmatprep.mubr.bf16.mxu0 0
  %524 = vmatmul.mubr.bf16.gmra.mxu0 %v322
  %v525 = vpop.f32.mrf.mxu0
  %v526 = vadd.f32 %v101, %v525
  %v527 = vpop.f32.mrf.mxu0
  %v528 = vpop.f32.mrf.mxu0
  %v529 = vadd.f32 %v101, %v528
  %v530 = vpop.f32.mrf.mxu0
  %531 = vmatprep.mubr.bf16.mxu0 0
  %532 = vmatmul.mubr.bf16.gmra.mxu0 %v325
  %v533 = vpop.f32.mrf.mxu0
  %v534 = vadd.f32 %v101, %v533
  %v535 = vpop.f32.mrf.mxu0
  %v536 = vpop.f32.mrf.mxu0
  %v537 = vadd.f32 %v101, %v536
  %v538 = vpop.f32.mrf.mxu0
  %539 = vmatprep.mubr.bf16.mxu0 0
  %540 = vmatmul.mubr.bf16.gmra.mxu0 %v328
  %v541 = vpop.f32.mrf.mxu0
  %v542 = vadd.f32 %v101, %v541
  %v543 = vpop.f32.mrf.mxu0
  %v544 = vpop.f32.mrf.mxu0
  %v545 = vadd.f32 %v101, %v544
  %v546 = vpop.f32.mrf.mxu0
  %547 = vmatprep.mubr.bf16.mxu0 0
  %548 = vmatmul.mubr.bf16.gmra.mxu0 %v331
  %v549 = vpop.f32.mrf.mxu0
  %v550 = vadd.f32 %v101, %v549
  %v551 = vpop.f32.mrf.mxu0
  %v552 = vpop.f32.mrf.mxu0
  %v553 = vadd.f32 %v101, %v552
  %v554 = vpop.f32.mrf.mxu0
  %555 = vmatprep.mubr.bf16.mxu0 0
  %556 = vmatmul.mubr.bf16.gmra.mxu0 %v334
  %v557 = vpop.f32.mrf.mxu0
  %v558 = vadd.f32 %v101, %v557
  %v559 = vpop.f32.mrf.mxu0
  %v560 = vpop.f32.mrf.mxu0
  %v561 = vadd.f32 %v101, %v560
  %v562 = vpop.f32.mrf.mxu0
  %563 = vmatprep.mubr.bf16.mxu0 0
  %564 = vmatmul.mubr.bf16.gmra.mxu0 %v337
  %v565 = vpop.f32.mrf.mxu0
  %v566 = vadd.f32 %v101, %v565
  %v567 = vpop.f32.mrf.mxu0
  %v568 = vpop.f32.mrf.mxu0
  %v569 = vadd.f32 %v101, %v568
  %v570 = vpop.f32.mrf.mxu0
  %571 = vmatprep.mubr.bf16.mxu0 0
  %572 = vmatmul.mubr.bf16.gmra.mxu0 %v340
  %v573 = vpop.f32.mrf.mxu0
  %v574 = vadd.f32 %v101, %v573
  %v575 = vpop.f32.mrf.mxu0
  %v576 = vpop.f32.mrf.mxu0
  %v577 = vadd.f32 %v101, %v576
  %v578 = vpop.f32.mrf.mxu0
  %579 = vmatprep.mubr.bf16.mxu0 0
  %580 = vmatmul.mubr.bf16.gmra.mxu0 %v343
  %v581 = vpop.f32.mrf.mxu0
  %v582 = vadd.f32 %v101, %v581
  %v583 = vpop.f32.mrf.mxu0
  %v584 = vpop.f32.mrf.mxu0
  %v585 = vadd.f32 %v101, %v584
  %v586 = vpop.f32.mrf.mxu0
  %587 = vmatprep.mubr.bf16.mxu0 0
  %588 = vmatmul.mubr.bf16.gmra.mxu0 %v346
  %v589 = vpop.f32.mrf.mxu0
  %v590 = vadd.f32 %v101, %v589
  %v591 = vpop.f32.mrf.mxu0
  %v592 = vpop.f32.mrf.mxu0
  %v593 = vadd.f32 %v101, %v592
  %v594 = vpop.f32.mrf.mxu0
  %595 = vmatprep.mubr.bf16.mxu0 0
  %596 = vmatmul.mubr.bf16.gmra.mxu0 %v349
  %v597 = vpop.f32.mrf.mxu0
  %v598 = vadd.f32 %v101, %v597
  %v599 = vpop.f32.mrf.mxu0
  %v600 = vpop.f32.mrf.mxu0
  %v601 = vadd.f32 %v101, %v600
  %v602 = vpop.f32.mrf.mxu0
  %603 = vmatprep.mubr.bf16.mxu0 0
  %604 = vmatmul.mubr.bf16.gmra.mxu0 %v352
  %v605 = vpop.f32.mrf.mxu0
  %v606 = vadd.f32 %v101, %v605
  %v607 = vpop.f32.mrf.mxu0
  %v608 = vpop.f32.mrf.mxu0
  %v609 = vadd.f32 %v101, %v608
  %v610 = vpop.f32.mrf.mxu0
  %611 = vmatprep.mubr.bf16.mxu0 0
  %612 = vmatmul.mubr.bf16.gmra.mxu0 %v355
  %v613 = vpop.f32.mrf.mxu0
  %v614 = vadd.f32 %v101, %v613
  %v615 = vpop.f32.mrf.mxu0
  %v616 = vpop.f32.mrf.mxu0
  %v617 = vadd.f32 %v101, %v616
  %v618 = vpop.f32.mrf.mxu0
  %619 = vmatprep.mubr.bf16.mxu0 0
  %620 = vmatmul.mubr.bf16.gmra.mxu0 %v358
  %v621 = vpop.f32.mrf.mxu0
  %v622 = vadd.f32 %v101, %v621
  %v623 = vpop.f32.mrf.mxu0
  %v624 = vpop.f32.mrf.mxu0
  %v625 = vadd.f32 %v101, %v624
  %v626 = vpop.f32.mrf.mxu0
  %627 = vmatprep.mubr.bf16.mxu0 0
  %628 = vmatmul.mubr.bf16.gmra.mxu0 %v361
  %v629 = vpop.f32.mrf.mxu0
  %v630 = vadd.f32 %v101, %v629
  %v631 = vpop.f32.mrf.mxu0
  %v632 = vpop.f32.mrf.mxu0
  %v633 = vadd.f32 %v101, %v632
  %v634 = vpop.f32.mrf.mxu0
  %635 = vmatprep.mubr.bf16.mxu0 0
  %636 = vmatmul.mubr.bf16.gmra.mxu0 %v364
  %v637 = vpop.f32.mrf.mxu0
  %v638 = vadd.f32 %v101, %v637
  %v639 = vpop.f32.mrf.mxu0
  %v640 = vpop.f32.mrf.mxu0
  %v641 = vadd.f32 %v101, %v640
  %v642 = vpop.f32.mrf.mxu0
  %643 = vmatprep.mubr.bf16.mxu0 0
  %644 = vmatmul.mubr.bf16.gmra.mxu0 %v367
  %v645 = vpop.f32.mrf.mxu0
  %v646 = vadd.f32 %v101, %v645
  %v647 = vpop.f32.mrf.mxu0
  %v648 = vpop.f32.mrf.mxu0
  %v649 = vadd.f32 %v101, %v648
  %v650 = vpop.f32.mrf.mxu0
  %651 = vmatprep.mubr.bf16.mxu0 0
  %652 = vmatmul.mubr.bf16.gmra.mxu0 %v370
  %v653 = vpop.f32.mrf.mxu0
  %v654 = vadd.f32 %v101, %v653
  %v655 = vpop.f32.mrf.mxu0
  %v656 = vpop.f32.mrf.mxu0
  %v657 = vadd.f32 %v101, %v656
  %v658 = vpop.f32.mrf.mxu0
  %659 = vmatprep.mubr.bf16.mxu0 0
  %660 = vmatmul.mubr.bf16.gmra.mxu0 %v373
  %v661 = vpop.f32.mrf.mxu0
  %v662 = vadd.f32 %v101, %v661
  %v663 = vpop.f32.mrf.mxu0
  %v664 = vpop.f32.mrf.mxu0
  %v665 = vadd.f32 %v101, %v664
  %v666 = vpop.f32.mrf.mxu0
  %667 = vdwg.mxu0
  %v668 = vmax.f32 %v414, 0.0
  %v669 = vmax.f32 %v417, 0.0
  %v670 = vmax.f32 %v422, 0.0
  %v671 = vmax.f32 %v425, 0.0
  %v672 = vmax.f32 %v430, 0.0
  %v673 = vmax.f32 %v433, 0.0
  %v674 = vmax.f32 %v438, 0.0
  %v675 = vmax.f32 %v441, 0.0
  %v676 = vmax.f32 %v446, 0.0
  %v677 = vmax.f32 %v449, 0.0
  %v678 = vmax.f32 %v454, 0.0
  %v679 = vmax.f32 %v457, 0.0
  %v680 = vmax.f32 %v462, 0.0
  %v681 = vmax.f32 %v465, 0.0
  %v682 = vmax.f32 %v470, 0.0
  %v683 = vmax.f32 %v473, 0.0
  %v684 = vmax.f32 %v478, 0.0
  %v685 = vmax.f32 %v481, 0.0
  %v686 = vmax.f32 %v486, 0.0
  %v687 = vmax.f32 %v489, 0.0
  %v688 = vmax.f32 %v494, 0.0
  %v689 = vmax.f32 %v497, 0.0
  %v690 = vmax.f32 %v502, 0.0
  %v691 = vmax.f32 %v505, 0.0
  %v692 = vmax.f32 %v510, 0.0
  %v693 = vmax.f32 %v513, 0.0
  %v694 = vmax.f32 %v518, 0.0
  %v695 = vmax.f32 %v521, 0.0
  %v696 = vmax.f32 %v526, 0.0
  %v697 = vmax.f32 %v529, 0.0
  %v698 = vmax.f32 %v534, 0.0
  %v699 = vmax.f32 %v537, 0.0
  %v700 = vmax.f32 %v542, 0.0
  %v701 = vmax.f32 %v545, 0.0
  %v702 = vmax.f32 %v550, 0.0
  %v703 = vmax.f32 %v553, 0.0
  %v704 = vmax.f32 %v558, 0.0
  %v705 = vmax.f32 %v561, 0.0
  %v706 = vmax.f32 %v566, 0.0
  %v707 = vmax.f32 %v569, 0.0
  %v708 = vmax.f32 %v574, 0.0
  %v709 = vmax.f32 %v577, 0.0
  %v710 = vmax.f32 %v582, 0.0
  %v711 = vmax.f32 %v585, 0.0
  %v712 = vmax.f32 %v590, 0.0
  %v713 = vmax.f32 %v593, 0.0
  %v714 = vmax.f32 %v598, 0.0
  %v715 = vmax.f32 %v601, 0.0
  %v716 = vmax.f32 %v606, 0.0
  %v717 = vmax.f32 %v609, 0.0
  %v718 = vmax.f32 %v614, 0.0
  %v719 = vmax.f32 %v617, 0.0
  %v720 = vmax.f32 %v622, 0.0
  %v721 = vmax.f32 %v625, 0.0
  %v722 = vmax.f32 %v630, 0.0
  %v723 = vmax.f32 %v633, 0.0
  %v724 = vmax.f32 %v638, 0.0
  %v725 = vmax.f32 %v641, 0.0
  %v726 = vmax.f32 %v646, 0.0
  %v727 = vmax.f32 %v649, 0.0
  %v728 = vmax.f32 %v654, 0.0
  %v729 = vmax.f32 %v657, 0.0
  %v730 = vmax.f32 %v662, 0.0
  %v731 = vmax.f32 %v665, 0.0
  %vm732 = vcmask 261120
  %v733 = vsel %vm732, %v668, 0.0
  %v734 = vsel %vm732, %v669, 0.0
  %v735 = vadd.f32 %v733, %v734
  %v736 = vsel %vm732, %v670, 0.0
  %v737 = vadd.f32 %v735, %v736
  %v738 = vsel %vm732, %v671, 0.0
  %v739 = vadd.f32 %v737, %v738
  %v740 = vsel %vm732, %v672, 0.0
  %v741 = vadd.f32 %v739, %v740
  %v742 = vsel %vm732, %v673, 0.0
  %v743 = vadd.f32 %v741, %v742
  %v744 = vsel %vm732, %v674, 0.0
  %v745 = vadd.f32 %v743, %v744
  %v746 = vsel %vm732, %v675, 0.0
  %v747 = vadd.f32 %v745, %v746
  %v748 = vsel %vm732, %v676, 0.0
  %v749 = vadd.f32 %v747, %v748
  %v750 = vsel %vm732, %v677, 0.0
  %v751 = vadd.f32 %v749, %v750
  %v752 = vsel %vm732, %v678, 0.0
  %v753 = vadd.f32 %v751, %v752
  %v754 = vsel %vm732, %v679, 0.0
  %v755 = vadd.f32 %v753, %v754
  %v756 = vsel %vm732, %v680, 0.0
  %v757 = vadd.f32 %v755, %v756
  %v758 = vsel %vm732, %v681, 0.0
  %v759 = vadd.f32 %v757, %v758
  %v760 = vsel %vm732, %v682, 0.0
  %v761 = vadd.f32 %v759, %v760
  %v762 = vsel %vm732, %v683, 0.0
  %v763 = vadd.f32 %v761, %v762
  %v764 = vsel %vm732, %v684, 0.0
  %v765 = vadd.f32 %v763, %v764
  %v766 = vsel %vm732, %v685, 0.0
  %v767 = vadd.f32 %v765, %v766
  %v768 = vsel %vm732, %v686, 0.0
  %v769 = vadd.f32 %v767, %v768
  %v770 = vsel %vm732, %v687, 0.0
  %v771 = vadd.f32 %v769, %v770
  %v772 = vsel %vm732, %v688, 0.0
  %v773 = vadd.f32 %v771, %v772
  %v774 = vsel %vm732, %v689, 0.0
  %v775 = vadd.f32 %v773, %v774
  %v776 = vsel %vm732, %v690, 0.0
  %v777 = vadd.f32 %v775, %v776
  %v778 = vsel %vm732, %v691, 0.0
  %v779 = vadd.f32 %v777, %v778
  %v780 = vsel %vm732, %v692, 0.0
  %v781 = vadd.f32 %v779, %v780
  %v782 = vsel %vm732, %v693, 0.0
  %v783 = vadd.f32 %v781, %v782
  %v784 = vsel %vm732, %v694, 0.0
  %v785 = vadd.f32 %v783, %v784
  %v786 = vsel %vm732, %v695, 0.0
  %v787 = vadd.f32 %v785, %v786
  %v788 = vsel %vm732, %v696, 0.0
  %v789 = vadd.f32 %v787, %v788
  %v790 = vsel %vm732, %v697, 0.0
  %v791 = vadd.f32 %v789, %v790
  %v792 = vsel %vm732, %v698, 0.0
  %v793 = vadd.f32 %v791, %v792
  %v794 = vsel %vm732, %v699, 0.0
  %v795 = vadd.f32 %v793, %v794
  %v796 = vrot.slane %v795, 4
  %v797 = vadd.f32 %v795, %v796
  %v798 = vrot.slane %v797, 2
  %v799 = vadd.f32 %v797, %v798
  %v800 = vrot.slane %v799, 1
  %v801 = vadd.f32 %v799, %v800
  %v802 = vsel %vm732, %v700, 0.0
  %v803 = vsel %vm732, %v701, 0.0
  %v804 = vadd.f32 %v802, %v803
  %v805 = vsel %vm732, %v702, 0.0
  %v806 = vadd.f32 %v804, %v805
  %v807 = vsel %vm732, %v703, 0.0
  %v808 = vadd.f32 %v806, %v807
  %v809 = vsel %vm732, %v704, 0.0
  %v810 = vadd.f32 %v808, %v809
  %v811 = vsel %vm732, %v705, 0.0
  %v812 = vadd.f32 %v810, %v811
  %v813 = vsel %vm732, %v706, 0.0
  %v814 = vadd.f32 %v812, %v813
  %v815 = vsel %vm732, %v707, 0.0
  %v816 = vadd.f32 %v814, %v815
  %v817 = vsel %vm732, %v708, 0.0
  %v818 = vadd.f32 %v816, %v817
  %v819 = vsel %vm732, %v709, 0.0
  %v820 = vadd.f32 %v818, %v819
  %v821 = vsel %vm732, %v710, 0.0
  %v822 = vadd.f32 %v820, %v821
  %v823 = vsel %vm732, %v711, 0.0
  %v824 = vadd.f32 %v822, %v823
  %v825 = vsel %vm732, %v712, 0.0
  %v826 = vadd.f32 %v824, %v825
  %v827 = vsel %vm732, %v713, 0.0
  %v828 = vadd.f32 %v826, %v827
  %v829 = vsel %vm732, %v714, 0.0
  %v830 = vadd.f32 %v828, %v829
  %v831 = vsel %vm732, %v715, 0.0
  %v832 = vadd.f32 %v830, %v831
  %v833 = vsel %vm732, %v716, 0.0
  %v834 = vadd.f32 %v832, %v833
  %v835 = vsel %vm732, %v717, 0.0
  %v836 = vadd.f32 %v834, %v835
  %v837 = vsel %vm732, %v718, 0.0
  %v838 = vadd.f32 %v836, %v837
  %v839 = vsel %vm732, %v719, 0.0
  %v840 = vadd.f32 %v838, %v839
  %v841 = vsel %vm732, %v720, 0.0
  %v842 = vadd.f32 %v840, %v841
  %v843 = vsel %vm732, %v721, 0.0
  %v844 = vadd.f32 %v842, %v843
  %v845 = vsel %vm732, %v722, 0.0
  %v846 = vadd.f32 %v844, %v845
  %v847 = vsel %vm732, %v723, 0.0
  %v848 = vadd.f32 %v846, %v847
  %v849 = vsel %vm732, %v724, 0.0
  %v850 = vadd.f32 %v848, %v849
  %v851 = vsel %vm732, %v725, 0.0
  %v852 = vadd.f32 %v850, %v851
  %v853 = vsel %vm732, %v726, 0.0
  %v854 = vadd.f32 %v852, %v853
  %v855 = vsel %vm732, %v727, 0.0
  %v856 = vadd.f32 %v854, %v855
  %v857 = vsel %vm732, %v728, 0.0
  %v858 = vadd.f32 %v856, %v857
  %v859 = vsel %vm732, %v729, 0.0
  %v860 = vadd.f32 %v858, %v859
  %v861 = vsel %vm732, %v730, 0.0
  %v862 = vadd.f32 %v860, %v861
  %v863 = vsel %vm732, %v731, 0.0
  %v864 = vadd.f32 %v862, %v863
  %v865 = vrot.slane %v864, 4
  %v866 = vadd.f32 %v864, %v865
  %v867 = vrot.slane %v866, 2
  %v868 = vadd.f32 %v866, %v867
  %v869 = vrot.slane %v868, 1
  %v870 = vadd.f32 %v868, %v869
  %v871 = vld [vmem:[%s3] sm:$0xff]
  %v872 = vld [vmem:[%s3 + $0x8] sm:$0xff]
  %v873 = vld [vmem:[%s3 + $0x10] sm:$0xff]
  %v874 = vld [vmem:[%s3 + $0x18] sm:$0xff]
  %v875 = vld [vmem:[%s4] sm:$0x1]
  %v877 = vlaneseq
  %v878 = vshrl.u32 %v877, 7
  %v879 = vsub.s32 0, %v878
  %v880 = vrot.slane %v875, %v879
  %vm884 = vcmask 1041409
  %v885 = vsel %vm884, %v870, %v801
  %v886 = vsel %vm732, %v885, 0
  %888 = vmatprep.subr.mxu0 0.0
  %889 = vmatpush1.msra.mxu0 0.0
  %890 = vmatprep.subr.mxu0 0.0
  %891 = vmatpush1.msra.mxu0 0.0
  %892 = vmatprep.subr.mxu0 0.0
  %893 = vmatpush1.msra.mxu0 0.0
  %894 = vmatprep.subr.mxu0 0.0
  %895 = vmatpush1.msra.mxu0 0.0
  %896 = vmatprep.subr.mxu0 0.0
  %897 = vmatpush1.msra.mxu0 0.0
  %898 = vmatprep.subr.mxu0 0.0
  %899 = vmatpush1.msra.mxu0 0.0
  %900 = vmatprep.subr.mxu0 0.0
  %901 = vmatpush1.msra.mxu0 0.0
  %902 = vmatprep.subr.mxu0 0.0
  %903 = vmatpush1.msra.mxu0 0.0
  %904 = vmatprep.subr.mxu0 0.0
  %905 = vmatpush1.msra.mxu0 0.0
  %906 = vmatprep.subr.mxu0 0.0
  %907 = vmatpush1.msra.mxu0 0.0
  %908 = vmatprep.subr.mxu0 0.0
  %909 = vmatpush1.msra.mxu0 0.0
  %910 = vmatprep.subr.mxu0 0.0
  %911 = vmatpush1.msra.mxu0 0.0
  %912 = vmatprep.subr.mxu0 0.0
  %913 = vmatpush1.msra.mxu0 %v874
  %914 = vmatprep.subr.mxu0 0.0
  %915 = vmatpush1.msra.mxu0 %v873
  %916 = vmatprep.subr.mxu0 0.0
  %917 = vmatpush1.msra.mxu0 %v872
  %918 = vmatprep.subr.mxu0 0.0
  %919 = vmatpush1.msra.mxu0 %v871
  %920 = vmatprep.subr.mxu0 0.0
  %921 = vmatpush2.msra.mxu0 0.0
  %922 = vmatprep.subr.mxu0 0.0
  %923 = vmatpush2.msra.mxu0 0.0
  %924 = vmatprep.subr.mxu0 0.0
  %925 = vmatpush2.msra.mxu0 0.0
  %926 = vmatprep.subr.mxu0 0.0
  %927 = vmatpush2.msra.mxu0 0.0
  %928 = vmatprep.subr.mxu0 0.0
  %929 = vmatpush2.msra.mxu0 0.0
  %930 = vmatprep.subr.mxu0 0.0
  %931 = vmatpush2.msra.mxu0 0.0
  %932 = vmatprep.subr.mxu0 0.0
  %933 = vmatpush2.msra.mxu0 0.0
  %934 = vmatprep.subr.mxu0 0.0
  %935 = vmatpush2.msra.mxu0 0.0
  %936 = vmatprep.subr.mxu0 0.0
  %937 = vmatpush2.msra.mxu0 0.0
  %938 = vmatprep.subr.mxu0 0.0
  %939 = vmatpush2.msra.mxu0 0.0
  %940 = vmatprep.subr.mxu0 0.0
  %941 = vmatpush2.msra.mxu0 0.0
  %942 = vmatprep.subr.mxu0 0.0
  %943 = vmatpush2.msra.mxu0 0.0
  %944 = vmatprep.subr.mxu0 0.0
  %945 = vmatpush2.msra.mxu0 0.0
  %946 = vmatprep.subr.mxu0 0.0
  %947 = vmatpush2.msra.mxu0 0.0
  %948 = vmatprep.subr.mxu0 0.0
  %949 = vmatpush2.msra.mxu0 0.0
  %950 = vmatprep.subr.mxu0 0.0
  %951 = vmatpush2.msra.mxu0 0.0
  %952 = vmatprep.mubr.f32.mxu0 0.0
  %953 = vmatmul.mubr.f32.gmra.mxu0 %v886
  %v954 = vpop.f32.mrf.mxu0
  %v955 = vadd.f32 %v880, %v954
  %v956 = vpop.f32.mrf.mxu0
  %957 = vdwg.mxu0
  %v958 = vmax.f32 %v955, 0.0
  %v959 = vld [vmem:[%s5] sm:$0xff]
  %v960 = vld [vmem:[%s5 + $0x8] sm:$0xff]
  %v961 = vld [vmem:[%s5 + $0x10] sm:$0xff]
  %v962 = vld [vmem:[%s5 + $0x18] sm:$0xff]
  %v963 = vld [vmem:[%s6] sm:$0x1]
  %v965 = vlaneseq
  %v966 = vshrl.u32 %v965, 7
  %v967 = vsub.s32 0, %v966
  %v968 = vrot.slane %v963, %v967
  %v971 = vsel %vm732, %v958, 0
  %973 = vmatprep.subr.mxu0 0.0
  %974 = vmatpush1.msra.mxu0 0.0
  %975 = vmatprep.subr.mxu0 0.0
  %976 = vmatpush1.msra.mxu0 0.0
  %977 = vmatprep.subr.mxu0 0.0
  %978 = vmatpush1.msra.mxu0 0.0
  %979 = vmatprep.subr.mxu0 0.0
  %980 = vmatpush1.msra.mxu0 0.0
  %981 = vmatprep.subr.mxu0 0.0
  %982 = vmatpush1.msra.mxu0 0.0
  %983 = vmatprep.subr.mxu0 0.0
  %984 = vmatpush1.msra.mxu0 0.0
  %985 = vmatprep.subr.mxu0 0.0
  %986 = vmatpush1.msra.mxu0 0.0
  %987 = vmatprep.subr.mxu0 0.0
  %988 = vmatpush1.msra.mxu0 0.0
  %989 = vmatprep.subr.mxu0 0.0
  %990 = vmatpush1.msra.mxu0 0.0
  %991 = vmatprep.subr.mxu0 0.0
  %992 = vmatpush1.msra.mxu0 0.0
  %993 = vmatprep.subr.mxu0 0.0
  %994 = vmatpush1.msra.mxu0 0.0
  %995 = vmatprep.subr.mxu0 0.0
  %996 = vmatpush1.msra.mxu0 0.0
  %997 = vmatprep.subr.mxu0 0.0
  %998 = vmatpush1.msra.mxu0 %v962
  %999 = vmatprep.subr.mxu0 0.0
  %1000 = vmatpush1.msra.mxu0 %v961
  %1001 = vmatprep.subr.mxu0 0.0
  %1002 = vmatpush1.msra.mxu0 %v960
  %1003 = vmatprep.subr.mxu0 0.0
  %1004 = vmatpush1.msra.mxu0 %v959
  %1005 = vmatprep.subr.mxu0 0.0
  %1006 = vmatpush2.msra.mxu0 0.0
  %1007 = vmatprep.subr.mxu0 0.0
  %1008 = vmatpush2.msra.mxu0 0.0
  %1009 = vmatprep.subr.mxu0 0.0
  %1010 = vmatpush2.msra.mxu0 0.0
  %1011 = vmatprep.subr.mxu0 0.0
  %1012 = vmatpush2.msra.mxu0 0.0
  %1013 = vmatprep.subr.mxu0 0.0
  %1014 = vmatpush2.msra.mxu0 0.0
  %1015 = vmatprep.subr.mxu0 0.0
  %1016 = vmatpush2.msra.mxu0 0.0
  %1017 = vmatprep.subr.mxu0 0.0
  %1018 = vmatpush2.msra.mxu0 0.0
  %1019 = vmatprep.subr.mxu0 0.0
  %1020 = vmatpush2.msra.mxu0 0.0
  %1021 = vmatprep.subr.mxu0 0.0
  %1022 = vmatpush2.msra.mxu0 0.0
  %1023 = vmatprep.subr.mxu0 0.0
  %1024 = vmatpush2.msra.mxu0 0.0
  %1025 = vmatprep.subr.mxu0 0.0
  %1026 = vmatpush2.msra.mxu0 0.0
  %1027 = vmatprep.subr.mxu0 0.0
  %1028 = vmatpush2.msra.mxu0 0.0
  %1029 = vmatprep.subr.mxu0 0.0
  %1030 = vmatpush2.msra.mxu0 0.0
  %1031 = vmatprep.subr.mxu0 0.0
  %1032 = vmatpush2.msra.mxu0 0.0
  %1033 = vmatprep.subr.mxu0 0.0
  %1034 = vmatpush2.msra.mxu0 0.0
  %1035 = vmatprep.subr.mxu0 0.0
  %1036 = vmatpush2.msra.mxu0 0.0
  %1037 = vmatprep.mubr.f32.mxu0 0.0
  %1038 = vmatmul.mubr.f32.gmra.mxu0 %v971
  %v1039 = vpop.f32.mrf.mxu0
  %v1040 = vadd.f32 %v968, %v1039
  %v1041 = vpop.f32.mrf.mxu0
  %1042 = vdwg.mxu0
  %1044 = vrot.lane.b32.xlu0 %v1040, 32
  %v1045 = vpop.permute.xlu0 %1044
  %v1047 = vsel %vm732, %v958, %v1045
  %vm1048 = vcmask 326656
  %v1049 = vsel %vm1048, %v1047, 0.0
  %1050 = vst [vmem:[%s7] sm:$0x3] %v1049
  // Predicated region
  $region30: #{_forward_impl.1} parent=0 // pred_check
    _
  $region31: #{_forward_impl.1} parent=0 // pred_check_branch
    %1052 = sbr.rel (0) target = $region33
  $region32: #{_forward_impl.1} parent=0 // pred_region
    _
  $region33: #{_forward_impl.1} parent=0 // pred_fallthru
    _
  // Predicated region
  $region34: #{_forward_impl.1} parent=0 // pred_check
    _
  $region35: #{_forward_impl.1} parent=0 // pred_check_branch
    %1054 = sbr.rel (0) target = $region37
  $region36: #{_forward_impl.1} parent=0 // pred_region
    _
  $region37: #{_forward_impl.1} parent=0 // pred_fallthru
    _

</llo_original>
